<compile_context>
chip_gen: v5e
topology: v5e:2x2
jax: 0.10.0
libtpu: 0.0.40
codegen_flags: <defaults>
</compile_context>

<pallas_src>
import functools

import jax
import jax.numpy as jnp
from jax import lax
from jax.experimental import pallas as pl
from jax.experimental.pallas import tpu as pltpu


def _propagator_kernel(adj_ref, x_ref, w_ref, b_ref, out_ref,
                       ain_scr, aout_scr, *,
                       block_b, num_nodes, state_dim, mxu_dtype):
    N, D = num_nodes, state_dim

    # ---- adjacency matmuls: per-batch (N,N)@(N,D) written straight into
    # (M, D) VMEM scratch.  a_out contracts adj axis 0 (adj^T @ x) without
    # materializing a transpose.
    def adj_step(b, carry):
        row = pl.multiple_of(b * N, N)
        adj_b = adj_ref[b].astype(mxu_dtype)                   # (N, N)
        x_b = x_ref[pl.ds(row, N), :].astype(mxu_dtype)        # (N, D)
        ain_scr[pl.ds(row, N), :] = jnp.dot(
            adj_b, x_b, preferred_element_type=jnp.float32)
        aout_scr[pl.ds(row, N), :] = lax.dot_general(
            adj_b, x_b,
            dimension_numbers=(((0,), (0,)), ((), ())),
            preferred_element_type=jnp.float32)
        return carry

    lax.fori_loop(0, block_b, adj_step, None, unroll=bool(block_b <= 8))

    x = x_ref[...]                                             # (M, D) f32
    a_in = ain_scr[...].astype(mxu_dtype)
    a_out = aout_scr[...].astype(mxu_dtype)

    # ---- shared [a_in | a_out] contribution to all three gates (+ all
    # biases), as two 3D-wide MXU passes.  Weight slices are read straight
    # from the VMEM ref.
    shared = (jnp.dot(a_in, w_ref[0:D, :], preferred_element_type=jnp.float32)
              + jnp.dot(a_out, w_ref[D:2 * D, :],
                        preferred_element_type=jnp.float32)
              + b_ref[...])                                    # (M, 3D) f32

    x_mx = x.astype(mxu_dtype)

    # reset / update gates: add the x-dependent rows of [W_r | W_z].
    rz = jax.nn.sigmoid(
        shared[:, 0:2 * D]
        + jnp.dot(x_mx, w_ref[2 * D:3 * D, 0:2 * D],
                  preferred_element_type=jnp.float32))         # (M, 2D)
    r = rz[:, 0:D]
    z = rz[:, D:2 * D]

    # transform gate: add the (r*x)-dependent rows of W_t.
    h_hat = jnp.tanh(
        shared[:, 2 * D:3 * D]
        + jnp.dot((r * x).astype(mxu_dtype), w_ref[2 * D:3 * D, 2 * D:3 * D],
                  preferred_element_type=jnp.float32))         # (M, D)

    out_ref[...] = ((1.0 - z) * x + z * h_hat).astype(out_ref.dtype)


def _vmem_capacity_bytes():
    try:
        cap = getattr(pltpu.get_tpu_info(), "vmem_capacity_bytes", None)
        if cap:
            return int(cap)
    except Exception:
        pass
    return 64 * 1024 * 1024  # conservative fallback (v7x per-TC VMEM)


def _step_bytes(block_b, N, D, w_itemsize):
    M = block_b * N
    return (2 * 4 * (block_b * N * N + 2 * M * D)   # double-buffered adj/x/out
            + 2 * 4 * M * D                          # a_in / a_out scratch
            + w_itemsize * 9 * D * D + 4 * 3 * D)    # single-buffered weights


def _pick_block_b(batch, num_nodes, state_dim, vmem_cap, w_itemsize):
    """Batch block reaching the per-generation MXU row target within VMEM,
    while keeping >= 2 grid steps so v7x can shard across its two cores."""
    N, D = num_nodes, state_dim
    target_rows = 512 if vmem_cap >= 96 * 1024 * 1024 else 256
    budget = int(0.45 * vmem_cap)
    max_bb = max(1, batch // 2) if batch >= 2 else 1
    divisors = [d for d in range(1, batch + 1) if batch % d == 0]
    cand = [d for d in divisors
            if d <= max_bb
            and _step_bytes(d, N, D, w_itemsize) <= budget
            and ((d * N) % 8 == 0 or d == batch)]
    if not cand:
        cand = [1]
    for d in cand:
        if d * N >= target_rows:
            return d
    return cand[-1]


def propagator_pallas(x, adj, w_r, b_r, w_z, b_z, w_t, b_t, *,
                      block_b=None, mxu_dtype=jnp.float32):
    """x: (B, N, D) f32; adj: (B, N, N) f32; w_*: (3D, D); b_*: (1, D)."""
    B, N, D = x.shape
    assert adj.shape == (B, N, N)

    vmem_cap = _vmem_capacity_bytes()
    w_itemsize = jnp.dtype(mxu_dtype).itemsize

    if block_b is None:
        block_b = _pick_block_b(B, N, D, vmem_cap, w_itemsize)
    assert B % block_b == 0
    if (block_b * N) % 8 != 0 and block_b != B:
        block_b = B          # satisfy the (8, x) sublane rule with a full block
    M = block_b * N

    # Pack all three gates side-by-side: columns [W_r | W_z | W_t], and cast
    # to the MXU dtype host-side (no per-step weight casts in the kernel).
    w_packed = jnp.concatenate([w_r, w_z, w_t], axis=1).astype(mxu_dtype)  # (3D, 3D)
    b_packed = jnp.concatenate([b_r, b_z, b_t], axis=1).astype(jnp.float32)  # (1, 3D)

    # Flatten (B, N, D) -> (B*N, D): gate linears become single big matmuls
    # with M = block_b*N rows per grid step.
    x_flat = x.reshape(B * N, D)

    kernel = functools.partial(
        _propagator_kernel, block_b=block_b, num_nodes=N, state_dim=D,
        mxu_dtype=mxu_dtype)

    flops = (4 * B * N * N * D          # two adjacency matmuls
             + 18 * B * N * D * D)      # gate-stage matmuls (K=D passes)
    bytes_accessed = 4 * (B * N * N + 2 * B * N * D) + w_itemsize * 9 * D * D + 4 * 3 * D
    cost = pl.CostEstimate(flops=flops,
                           transcendentals=3 * B * N * D,
                           bytes_accessed=bytes_accessed)

    step_bytes = _step_bytes(block_b, N, D, w_itemsize)
    vmem_limit = int(min(max(2 * step_bytes, 8 * 1024 * 1024),
                         int(0.75 * vmem_cap)))

    weight_space = pltpu.MemorySpace.VMEM   # grid-invariant: staged once, not double-buffered

    out_flat = pl.pallas_call(
        kernel,
        out_shape=jax.ShapeDtypeStruct((B * N, D), x.dtype),
        grid_spec=pltpu.PrefetchScalarGridSpec(
            num_scalar_prefetch=0,
            grid=(B // block_b,),
            in_specs=[
                pl.BlockSpec((block_b, N, N), lambda g: (g, 0, 0)),   # adj
                pl.BlockSpec((M, D), lambda g: (g, 0)),               # x (flat)
                pl.BlockSpec(memory_space=weight_space),              # [W_r|W_z|W_t]
                pl.BlockSpec(memory_space=weight_space),              # [b_r|b_z|b_t]
            ],
            out_specs=pl.BlockSpec((M, D), lambda g: (g, 0)),
            scratch_shapes=[
                pltpu.VMEM((M, D), jnp.float32),                      # a_in
                pltpu.VMEM((M, D), jnp.float32),                      # a_out
            ],
        ),
        compiler_params=pltpu.CompilerParams(
            dimension_semantics=("parallel",),
            vmem_limit_bytes=vmem_limit),
        cost_estimate=cost,
    )(adj, x_flat, w_packed, b_packed)

    return out_flat.reshape(B, N, D)


def propagator_ref(x, adj, w_r, b_r, w_z, b_z, w_t, b_t):
    """Pure-JAX reference mirroring the PyTorch forward exactly."""
    a_in = jnp.matmul(adj, x)
    a_out = jnp.matmul(jnp.swapaxes(adj, 1, 2), x)
    a = jnp.concatenate([a_in, a_out, x], axis=2)
    r = jax.nn.sigmoid(a @ w_r + b_r)
    z = jax.nn.sigmoid(a @ w_z + b_z)
    joined = jnp.concatenate([a_in, a_out, r * x], axis=2)
    h_hat = jnp.tanh(joined @ w_t + b_t)
    return (1.0 - z) * x + z * h_hat


def _init_linear(key, in_features, out_features):
    # Deterministic stand-in for nn.Linear default init:
    # U(-1/sqrt(fan_in), 1/sqrt(fan_in)). Weight stored transposed (in, out).
    kw, kb = jax.random.split(key)
    bound = 1.0 / jnp.sqrt(jnp.float32(in_features))
    w = jax.random.uniform(kw, (in_features, out_features), jnp.float32,
                           minval=-bound, maxval=bound)
    b = jax.random.uniform(kb, (1, out_features), jnp.float32,
                           minval=-bound, maxval=bound)
    return w, b


if __name__ == "__main__":
    B, N, D = 2, 16, 32  # batch, nodes, state_dim

    key = jax.random.PRNGKey(0)
    kx, kadj, kr, kz, kt = jax.random.split(key, 5)

    x = jax.random.normal(kx, (B, N, D), jnp.float32)
    adj = jax.random.uniform(kadj, (B, N, N), jnp.float32)

    w_r, b_r = _init_linear(kr, 3 * D, D)
    w_z, b_z = _init_linear(kz, 3 * D, D)
    w_t, b_t = _init_linear(kt, 3 * D, D)

    # jit the wrapper so weight packing / reshapes are hoisted into one program.
    fwd = jax.jit(propagator_pallas)
    out = jax.block_until_ready(fwd(x, adj, w_r, b_r, w_z, b_z, w_t, b_t))

    ref = propagator_ref(x, adj, w_r, b_r, w_z, b_z, w_t, b_t)
    assert out.shape == (B, N, D)
    assert jnp.allclose(out, ref, atol=1e-5, rtol=1e-5), "mismatch vs reference"

    print("KERNEL_OK")
</pallas_src>

<mosaic_0001>
module attributes {stable_mosaic.version = 11 : i64} {
  func.func @_propagator_kernel(%arg0: i32, %arg1: memref<1x16x16xf32, #tpu.memory_space<vmem>>, %arg2: memref<16x32xf32, #tpu.memory_space<vmem>>, %arg3: memref<96x96xf32, #tpu.memory_space<vmem>>, %arg4: memref<1x96xf32, #tpu.memory_space<vmem>>, %arg5: memref<16x32xf32, #tpu.memory_space<vmem>>, %arg6: memref<16x32xf32, #tpu.memory_space<vmem>>, %arg7: memref<16x32xf32, #tpu.memory_space<vmem>>) attributes {dimension_semantics = [#tpu.dimension_semantics<parallel>], iteration_bounds = array<i64: 2>, scalar_prefetch = 0 : i64, scratch_operands = 2 : i64, tpu.core_type = #tpu.core_type<tc>, window_params = [{transform_indices = @transform_0, window_bounds = array<i64: 1, 16, 16>}, {transform_indices = @transform_1, window_bounds = array<i64: 16, 32>}, {pipeline_mode = #tpu.pipeline_mode<synchronous>, transform_indices = @transform_2, window_bounds = array<i64: 96, 96>}, {pipeline_mode = #tpu.pipeline_mode<synchronous>, transform_indices = @transform_3, window_bounds = array<i64: 1, 96>}, {transform_indices = @transform_4, window_bounds = array<i64: 16, 32>}]} {
    %c0_i32 = arith.constant 0 : i32
    %c16_i32 = arith.constant 16 : i32
    %0 = arith.muli %c0_i32, %c16_i32 : i32
    %1 = tpu.assume_multiple %0, 16 : i32
    %2 = arith.index_cast %c0_i32 : i32 to index
    %c0 = arith.constant 0 : index
    %c0_0 = arith.constant 0 : index
    %3 = vector.load %arg1[%2, %c0, %c0_0] : memref<1x16x16xf32, #tpu.memory_space<vmem>>, vector<1x16x16xf32>
    %4 = vector.shape_cast %3 : vector<1x16x16xf32> to vector<16x16xf32>
    %5 = arith.index_cast %1 : i32 to index
    %c0_1 = arith.constant 0 : index
    %6 = vector.load %arg2[%5, %c0_1] : memref<16x32xf32, #tpu.memory_space<vmem>>, vector<16x32xf32>
    %cst = arith.constant dense<0.000000e+00> : vector<16x32xf32>
    %7 = tpu.matmul %4, %6, %cst {dimension_numbers = #tpu.dot_dimension_numbers<[1], [0], [0], [1], [0, 0, 1, 1], [], []>} : vector<16x16xf32>, vector<16x32xf32>, vector<16x32xf32> -> vector<16x32xf32>
    %8 = arith.index_cast %1 : i32 to index
    %c0_2 = arith.constant 0 : index
    %9 = vector.load %arg6[%8, %c0_2] : memref<16x32xf32, #tpu.memory_space<vmem>>, vector<16x32xf32>
    tpu.vector_store %arg6[%8, %c0_2], %7 {strides = array<i32>} : memref<16x32xf32, #tpu.memory_space<vmem>>, vector<16x32xf32>,
    %cst_3 = arith.constant dense<0.000000e+00> : vector<16x32xf32>
    %10 = tpu.matmul %4, %6, %cst_3 {dimension_numbers = #tpu.dot_dimension_numbers<[0], [0], [1], [1], [0, 1, 1, 1], [], []>} : vector<16x16xf32>, vector<16x32xf32>, vector<16x32xf32> -> vector<16x32xf32>
    %11 = arith.index_cast %1 : i32 to index
    %c0_4 = arith.constant 0 : index
    %12 = vector.load %arg7[%11, %c0_4] : memref<16x32xf32, #tpu.memory_space<vmem>>, vector<16x32xf32>
    tpu.vector_store %arg7[%11, %c0_4], %10 {strides = array<i32>} : memref<16x32xf32, #tpu.memory_space<vmem>>, vector<16x32xf32>,
    %c1_i32 = arith.constant 1 : i32
    %c0_5 = arith.constant 0 : index
    %c0_6 = arith.constant 0 : index
    %13 = vector.load %arg2[%c0_5, %c0_6] : memref<16x32xf32, #tpu.memory_space<vmem>>, vector<16x32xf32>
    %c0_7 = arith.constant 0 : index
    %c0_8 = arith.constant 0 : index
    %14 = vector.load %arg6[%c0_7, %c0_8] : memref<16x32xf32, #tpu.memory_space<vmem>>, vector<16x32xf32>
    %c0_9 = arith.constant 0 : index
    %c0_10 = arith.constant 0 : index
    %15 = vector.load %arg7[%c0_9, %c0_10] : memref<16x32xf32, #tpu.memory_space<vmem>>, vector<16x32xf32>
    %c0_11 = arith.constant 0 : index
    %c0_12 = arith.constant 0 : index
    %16 = vector.load %arg3[%c0_11, %c0_12] : memref<96x96xf32, #tpu.memory_space<vmem>>, vector<32x96xf32>
    %cst_13 = arith.constant dense<0.000000e+00> : vector<16x96xf32>
    %17 = tpu.matmul %14, %16, %cst_13 {dimension_numbers = #tpu.dot_dimension_numbers<[1], [0], [0], [1], [0, 0, 1, 1], [], []>} : vector<16x32xf32>, vector<32x96xf32>, vector<16x96xf32> -> vector<16x96xf32>
    %c32 = arith.constant 32 : index
    %c0_14 = arith.constant 0 : index
    %18 = vector.load %arg3[%c32, %c0_14] : memref<96x96xf32, #tpu.memory_space<vmem>>, vector<32x96xf32>
    %cst_15 = arith.constant dense<0.000000e+00> : vector<16x96xf32>
    %19 = tpu.matmul %15, %18, %cst_15 {dimension_numbers = #tpu.dot_dimension_numbers<[1], [0], [0], [1], [0, 0, 1, 1], [], []>} : vector<16x32xf32>, vector<32x96xf32>, vector<16x96xf32> -> vector<16x96xf32>
    %20 = arith.addf %17, %19 : vector<16x96xf32>
    %c0_16 = arith.constant 0 : index
    %c0_17 = arith.constant 0 : index
    %21 = vector.load %arg4[%c0_16, %c0_17] : memref<1x96xf32, #tpu.memory_space<vmem>>, vector<1x96xf32>
    %22 = vector.broadcast %21 : vector<1x96xf32> to vector<16x96xf32>
    %23 = arith.addf %20, %22 : vector<16x96xf32>
    %24 = vector.extract_strided_slice %23 {offsets = [0, 0], sizes = [16, 64], strides = [1, 1]} : vector<16x96xf32> to vector<16x64xf32>
    %c64 = arith.constant 64 : index
    %c0_18 = arith.constant 0 : index
    %25 = vector.load %arg3[%c64, %c0_18] : memref<96x96xf32, #tpu.memory_space<vmem>>, vector<32x64xf32>
    %cst_19 = arith.constant dense<0.000000e+00> : vector<16x64xf32>
    %26 = tpu.matmul %13, %25, %cst_19 {dimension_numbers = #tpu.dot_dimension_numbers<[1], [0], [0], [1], [0, 0, 1, 1], [], []>} : vector<16x32xf32>, vector<32x64xf32>, vector<16x64xf32> -> vector<16x64xf32>
    %27 = arith.addf %24, %26 : vector<16x64xf32>
    %28 = arith.negf %27 : vector<16x64xf32>
    %29 = math.exp %28 : vector<16x64xf32>
    %cst_20 = arith.constant 1.000000e+00 : f32
    %30 = vector.broadcast %cst_20 : f32 to vector<16x64xf32>
    %31 = arith.addf %30, %29 : vector<16x64xf32>
    %32 = arith.divf %30, %31 : vector<16x64xf32>
    %33 = vector.extract_strided_slice %32 {offsets = [0, 0], sizes = [16, 32], strides = [1, 1]} : vector<16x64xf32> to vector<16x32xf32>
    %34 = vector.extract_strided_slice %32 {offsets = [0, 32], sizes = [16, 32], strides = [1, 1]} : vector<16x64xf32> to vector<16x32xf32>
    %35 = vector.extract_strided_slice %23 {offsets = [0, 64], sizes = [16, 32], strides = [1, 1]} : vector<16x96xf32> to vector<16x32xf32>
    %36 = arith.mulf %33, %13 : vector<16x32xf32>
    %c64_21 = arith.constant 64 : index
    %c64_22 = arith.constant 64 : index
    %37 = vector.load %arg3[%c64_21, %c64_22] : memref<96x96xf32, #tpu.memory_space<vmem>>, vector<32x32xf32>
    %cst_23 = arith.constant dense<0.000000e+00> : vector<16x32xf32>
    %38 = tpu.matmul %36, %37, %cst_23 {dimension_numbers = #tpu.dot_dimension_numbers<[1], [0], [0], [1], [0, 0, 1, 1], [], []>} : vector<16x32xf32>, vector<32x32xf32>, vector<16x32xf32> -> vector<16x32xf32>
    %39 = arith.addf %35, %38 : vector<16x32xf32>
    %40 = math.tanh %39 : vector<16x32xf32>
    %cst_24 = arith.constant 1.000000e+00 : f32
    %41 = vector.broadcast %cst_24 : f32 to vector<16x32xf32>
    %42 = arith.subf %41, %34 : vector<16x32xf32>
    %43 = arith.mulf %42, %13 : vector<16x32xf32>
    %44 = arith.mulf %34, %40 : vector<16x32xf32>
    %45 = arith.addf %43, %44 : vector<16x32xf32>
    %c0_25 = arith.constant 0 : index
    %c0_26 = arith.constant 0 : index
    %46 = vector.load %arg5[%c0_25, %c0_26] : memref<16x32xf32, #tpu.memory_space<vmem>>, vector<16x32xf32>
    tpu.vector_store %arg5[%c0_25, %c0_26], %45 {strides = array<i32>} : memref<16x32xf32, #tpu.memory_space<vmem>>, vector<16x32xf32>,
    return
  }
  func.func @transform_0(%arg0: i32) -> (i32, i32, i32) {
    %c0_i32 = arith.constant 0 : i32
    %c0_i32_0 = arith.constant 0 : i32
    %c0_i32_1 = arith.constant 0 : i32
    return %arg0, %c0_i32, %c0_i32_0 : i32, i32, i32
  }
  func.func @transform_1(%arg0: i32) -> (i32, i32) {
    %c0_i32 = arith.constant 0 : i32
    %c0_i32_0 = arith.constant 0 : i32
    return %arg0, %c0_i32 : i32, i32
  }
  func.func @transform_2(%arg0: i32) -> (i32, i32) {
    %c0_i32 = arith.constant 0 : i32
    %c0_i32_0 = arith.constant 0 : i32
    %c0_i32_1 = arith.constant 0 : i32
    return %c0_i32, %c0_i32_0 : i32, i32
  }
  func.func @transform_3(%arg0: i32) -> (i32, i32) {
    %c0_i32 = arith.constant 0 : i32
    %c0_i32_0 = arith.constant 0 : i32
    %c0_i32_1 = arith.constant 0 : i32
    return %c0_i32, %c0_i32_0 : i32, i32
  }
  func.func @transform_4(%arg0: i32) -> (i32, i32) {
    %c0_i32 = arith.constant 0 : i32
    %c0_i32_0 = arith.constant 0 : i32
    return %arg0, %c0_i32 : i32, i32
  }
}

</mosaic_0001>

<llo_original>
// kernel: propagator_pallas.1
$region0: #{propagator_pallas.1}
  #allocation0 [shape = 'u32[]', space=smem, size = 0x4, offset = 0x4, fixed_abs, tag = 'smem constant byte address 0x4 - core index']
  #allocation1 [shape = 'u32[72,128]{1,0:T(1,128)}', space=vmem, size = 0x9000, scoped, tag = 'internal scratch']
  #allocation2 [shape = 'f32[16,32]{1,0:T(8,128)}', space=vmem, size = 0x2000, scoped, tag = 'scratch operand']
  #allocation3 [shape = 'f32[16,32]{1,0:T(8,128)}', space=vmem, size = 0x2000, scoped, tag = 'scratch operand']
  %s0 = inlined_call_operand.vmem [shape: f32[2,16,16], index: 0, kind: input, shape index: {}]
  %s1 = inlined_call_operand.vmem [shape: f32[32,32], index: 1, kind: input, shape index: {}]
  %s2 = inlined_call_operand.vmem [shape: f32[96,96], index: 2, kind: input, shape index: {}]
  %s3 = inlined_call_operand.vmem [shape: f32[1,96], index: 3, kind: input, shape index: {}]
  %s4 = inlined_call_operand.hbm [shape: f32[32,32], index: 4, kind: output, shape index: {}]
  %s5 = sld [smem:[#allocation0]]
  $region49: #{propagator_pallas.1} parent=0
    _
  %s7 = ssub.s32 1, %s5
  %s8 = scalar_select 0, %s7, %s5
  $region1: #{propagator_pallas.1} parent=0
    #allocation4 [shape = 'u8[16384]{0}', space=vmem, size = 0x4000, scoped, tag = 'output window, operand 0']
    #allocation5 [shape = 's32[2]{0}', space=sflag, size = 0x8, scoped, tag = 'scoped memory for propagator_pallas.1']
    %9 = vsyncpa [#allocation5], 0
    %s10 = scalar_lea.sflag [#allocation5], 1
    %11 = vsyncpa %s10, 0
    loop: start=0, step=1, limit=4
    $region2: #{propagator_pallas.1} parent=1 // loop_pre_header
      _
    $region3: #{propagator_pallas.1} parent=1 // loop_header
      %s13 = sphi 0, %s17
      %p14 = scmp.ge.s32.totalorder %s13, 4
      %s23 = sphi 0, %s25
      %s26 = sphi 0, %s23
      %s27 = sphi 0, %s26
      %s43 = sphi 0, %s27
      %s49 = sphi 0, %s51
      %s52 = sphi 0, %s49
      %s53 = sphi 0, %s52
      %s69 = sphi 0, %s53
      %s73 = sphi 0, %s73
      %s75 = sphi 0, %s73
      %s76 = sphi 0, %s75
      %s90 = sphi 0, %s76
      %s94 = sphi 0, %s94
      %s96 = sphi 0, %s94
      %s97 = sphi 0, %s96
      %s111 = sphi 0, %s97
      %s117 = sphi 0, %s119
      %s120 = sphi 0, %s117
      %s121 = sphi 0, %s120
      %s137 = sphi 0, %s121
    $region4: #{propagator_pallas.1} parent=1 // loop_header_branch
      %16 = sbr.rel (%p14) target = $region8
    $region5: #{propagator_pallas.1} parent=1 // loop_body
      %s18 = ssub.s32 %s13, 1
      %s19 = ssub.s32 %s13, 2
      %s20 = sadd.s32 %s13, 1
      %s21 = ssub.s32 %s13, %s20
      %p22 = scmp.eq.s32.totalorder %s21, 0
      %s24 = sadd.s32 %s23, 1
      %s25 = scalar_select %p22, %s23, %s24
      %p28 = pneg %p22
      %p29 = scmp.eq.s32.totalorder %s13, 1
      %p30 = por %p28, %p29
      %p31 = scmp.ne.s32.totalorder %s23, %s26
      %p32 = scmp.eq.s32.totalorder %s13, 0
      %p33 = por %p31, %p32
      %p34 = scmp.ne.s32.totalorder %s23, %s26
      %p35 = scmp.eq.s32.totalorder %s18, 1
      %p36 = por %p34, %p35
      %p37 = scmp.ne.s32.totalorder %s26, %s27
      %p38 = scmp.eq.s32.totalorder %s18, 0
      %p39 = por %p37, %p38
      %p40 = scmp.ne.s32.totalorder %s26, %s27
      %p41 = scmp.eq.s32.totalorder %s19, 1
      %p42 = por %p40, %p41
      %p44 = scmp.ne.s32.totalorder %s27, %s43
      %p45 = scmp.eq.s32.totalorder %s19, 0
      %p46 = por %p44, %p45
      %s47 = ssub.s32 %s13, %s20
      %p48 = scmp.eq.s32.totalorder %s47, 0
      %s50 = sadd.s32 %s49, 1
      %s51 = scalar_select %p48, %s49, %s50
      %p54 = pneg %p48
      %p55 = scmp.eq.s32.totalorder %s13, 1
      %p56 = por %p54, %p55
      %p57 = scmp.ne.s32.totalorder %s49, %s52
      %p58 = scmp.eq.s32.totalorder %s13, 0
      %p59 = por %p57, %p58
      %p60 = scmp.ne.s32.totalorder %s49, %s52
      %p61 = scmp.eq.s32.totalorder %s18, 1
      %p62 = por %p60, %p61
      %p63 = scmp.ne.s32.totalorder %s52, %s53
      %p64 = scmp.eq.s32.totalorder %s18, 0
      %p65 = por %p63, %p64
      %p66 = scmp.ne.s32.totalorder %s52, %s53
      %p67 = scmp.eq.s32.totalorder %s19, 1
      %p68 = por %p66, %p67
      %p70 = scmp.ne.s32.totalorder %s53, %s69
      %p71 = scmp.eq.s32.totalorder %s19, 0
      %p72 = por %p70, %p71
      %s74 = sadd.s32 %s73, 1
      %p77 = scmp.eq.s32.totalorder %s13, 1
      %p78 = scmp.ne.s32.totalorder %s73, %s75
      %p79 = scmp.eq.s32.totalorder %s13, 0
      %p80 = por %p78, %p79
      %p81 = scmp.ne.s32.totalorder %s73, %s75
      %p82 = scmp.eq.s32.totalorder %s18, 1
      %p83 = por %p81, %p82
      %p84 = scmp.ne.s32.totalorder %s75, %s76
      %p85 = scmp.eq.s32.totalorder %s18, 0
      %p86 = por %p84, %p85
      %p87 = scmp.ne.s32.totalorder %s75, %s76
      %p88 = scmp.eq.s32.totalorder %s19, 1
      %p89 = por %p87, %p88
      %p91 = scmp.ne.s32.totalorder %s76, %s90
      %p92 = scmp.eq.s32.totalorder %s19, 0
      %p93 = por %p91, %p92
      %s95 = sadd.s32 %s94, 1
      %p98 = scmp.eq.s32.totalorder %s13, 1
      %p99 = scmp.ne.s32.totalorder %s94, %s96
      %p100 = scmp.eq.s32.totalorder %s13, 0
      %p101 = por %p99, %p100
      %p102 = scmp.ne.s32.totalorder %s94, %s96
      %p103 = scmp.eq.s32.totalorder %s18, 1
      %p104 = por %p102, %p103
      %p105 = scmp.ne.s32.totalorder %s96, %s97
      %p106 = scmp.eq.s32.totalorder %s18, 0
      %p107 = por %p105, %p106
      %p108 = scmp.ne.s32.totalorder %s96, %s97
      %p109 = scmp.eq.s32.totalorder %s19, 1
      %p110 = por %p108, %p109
      %p112 = scmp.ne.s32.totalorder %s97, %s111
      %p113 = scmp.eq.s32.totalorder %s19, 0
      %p114 = por %p112, %p113
      %s115 = ssub.s32 %s13, %s20
      %p116 = scmp.eq.s32.totalorder %s115, 0
      %s118 = sadd.s32 %s117, 1
      %s119 = scalar_select %p116, %s117, %s118
      %p122 = pneg %p116
      %p123 = scmp.eq.s32.totalorder %s13, 1
      %p124 = por %p122, %p123
      %p125 = scmp.ne.s32.totalorder %s117, %s120
      %p126 = scmp.eq.s32.totalorder %s13, 0
      %p127 = por %p125, %p126
      %p128 = scmp.ne.s32.totalorder %s117, %s120
      %p129 = scmp.eq.s32.totalorder %s18, 1
      %p130 = por %p128, %p129
      %p131 = scmp.ne.s32.totalorder %s120, %s121
      %p132 = scmp.eq.s32.totalorder %s18, 0
      %p133 = por %p131, %p132
      %p134 = scmp.ne.s32.totalorder %s120, %s121
      %p135 = scmp.eq.s32.totalorder %s19, 1
      %p136 = por %p134, %p135
      %p138 = scmp.ne.s32.totalorder %s121, %s137
      %p139 = scmp.eq.s32.totalorder %s19, 0
      %p140 = por %p138, %p139
      %p141 = scmp.le.s32.totalorder 1, %s13
      %p142 = scmp.lt.s32.totalorder %s13, 3
      %p143 = pnand %p141, %p142
      %p144 = pneg %p143
      // Predicated region
      $region9: #{propagator_pallas.1} parent=5 // pred_check
        _
      $region10: #{propagator_pallas.1} parent=5 // pred_check_branch
        %146 = sbr.rel (%p143) target = $region12
      $region11: #{propagator_pallas.1} parent=5 // pred_region
        %s147 = ssub.s32 %s13, 1
        // Predicated region
        $region13: #{propagator_pallas.1} parent=11 // pred_check
          %p148 = pneg %p86
        $region14: #{propagator_pallas.1} parent=11 // pred_check_branch
          %150 = sbr.rel (%p148) target = $region16
        $region15: #{propagator_pallas.1} parent=11 // pred_region
          _
        $region16: #{propagator_pallas.1} parent=11 // pred_fallthru
          _
        // Predicated region
        $region17: #{propagator_pallas.1} parent=11 // pred_check
          %p151 = pneg %p107
        $region18: #{propagator_pallas.1} parent=11 // pred_check_branch
          %153 = sbr.rel (%p151) target = $region20
        $region19: #{propagator_pallas.1} parent=11 // pred_region
          _
        $region20: #{propagator_pallas.1} parent=11 // pred_fallthru
          _
      $region12: #{propagator_pallas.1} parent=5 // pred_fallthru
        _
      %p154 = scmp.lt.s32.totalorder %s13, 2
      // Predicated region
      $region21: #{propagator_pallas.1} parent=5 // pred_check
        %p155 = pneg %p154
      $region22: #{propagator_pallas.1} parent=5 // pred_check_branch
        %157 = sbr.rel (%p155) target = $region24
      $region23: #{propagator_pallas.1} parent=5 // pred_region
        // Predicated region
        $region25: #{propagator_pallas.1} parent=23 // pred_check
          %p158 = pneg %p33
        $region26: #{propagator_pallas.1} parent=23 // pred_check_branch
          %160 = sbr.rel (%p158) target = $region28
        $region27: #{propagator_pallas.1} parent=23 // pred_region
          %p161 = scmp.lt.s32.totalorder %s13, 1
          %s162 = scalar_select %p161, %s13, 1
          %s163 = smul.addr %s162, 2
          %s164 = smul.addr %s163, 8
          %s165 = scalar_lea.vmem %s0, %s164
        $region28: #{propagator_pallas.1} parent=23 // pred_fallthru
          _
        // Predicated region
        $region29: #{propagator_pallas.1} parent=23 // pred_check
          %p166 = pneg %p59
        $region30: #{propagator_pallas.1} parent=23 // pred_check_branch
          %168 = sbr.rel (%p166) target = $region32
        $region31: #{propagator_pallas.1} parent=23 // pred_region
          %s169 = smul.u32 2, %s13
          %p170 = scmp.lt.s32.totalorder %s169, 3
          %s171 = scalar_select %p170, %s169, 3
          %s172 = smul.addr %s171, 8
          %s173 = scalar_lea.vmem %s1, %s172
          %s174 = smul.u32 2, %s13
        $region32: #{propagator_pallas.1} parent=23 // pred_fallthru
          _
      $region24: #{propagator_pallas.1} parent=5 // pred_fallthru
        _
      %p175 = scmp.le.s32.totalorder 1, %s13
      %p176 = scmp.lt.s32.totalorder %s13, 3
      %p177 = pnand %p175, %p176
      %p178 = pneg %p177
      // Predicated region
      $region33: #{propagator_pallas.1} parent=5 // pred_check
        _
      $region34: #{propagator_pallas.1} parent=5 // pred_check_branch
        %180 = sbr.rel (%p177) target = $region36
      $region35: #{propagator_pallas.1} parent=5 // pred_region
        %s181 = ssub.s32 %s13, 1
        %p182 = scmp.lt.s32.totalorder %s18, 1
        %s183 = scalar_select %p182, %s18, 1
        %s184 = smul.addr %s183, 2
        %s185 = smul.addr %s184, 8
        %s186 = scalar_lea.vmem %s0, %s185
        %p187 = pneg %p39
        %p188 = pneg %p36
        %s189 = smul.u32 2, %s18
        %p190 = scmp.lt.s32.totalorder %s189, 3
        %s191 = scalar_select %p190, %s189, 3
        %s192 = smul.addr %s191, 8
        %s193 = scalar_lea.vmem %s1, %s192
        %p194 = pneg %p65
        %p195 = pneg %p62
        %p196 = pneg %p86
        %p197 = pneg %p83
        %p198 = pneg %p107
        %p199 = pneg %p104
        %p200 = pneg %p133
        %p201 = pneg %p130
        %s202 = sand.u32 %s120, 1
        %s203 = scalar_lea.sflag [#allocation5], %s202
        %s204 = sand.u32 %s120, 1
        %s205 = smul.addr %s204, 16
        %s206 = scalar_lea.vmem [#allocation4], %s205
        %p207 = scmp.lt.s32.totalorder %s18, 1
        %s208 = scalar_select %p207, %s18, 1
        %s209 = smul.addr %s208, 2
        %s210 = smul.addr %s209, 8
        %s211 = scalar_lea.vmem %s0, %s210
        %s212 = smul.u32 2, %s18
        %p213 = scmp.lt.s32.totalorder %s212, 3
        %s214 = scalar_select %p213, %s212, 3
        %s215 = smul.addr %s214, 8
        %s216 = scalar_lea.vmem %s1, %s215
        %s217 = smul.u32 2, %s18
        %s218 = smul.u32 2, %s18
        %v219 = vld [vmem:[%s211] sm:$0xff]
        %v220 = vld [vmem:[%s211 + $0x8] sm:$0xff]
        %v221 = vld [vmem:[%s216] sm:$0xff]
        %v222 = vld [vmem:[%s216 + $0x8] sm:$0xff]
        %vm223 = vcmask 130048
        %v225 = vsel %vm223, %v219, 0
        %v228 = vsel %vm223, %v220, 0
        %230 = vmatpush.msra.mxu0 0.0
        %231 = vmatpush.msra.mxu0 0.0
        %232 = vmatpush.msra.mxu0 0.0
        %233 = vmatpush.msra.mxu0 0.0
        %234 = vmatpush.msra.mxu0 0.0
        %235 = vmatpush.msra.mxu0 0.0
        %236 = vmatpush.msra.mxu0 0.0
        %237 = vmatpush.msra.mxu0 0.0
        %238 = vmatpush.msra.mxu0 0.0
        %239 = vmatpush.msra.mxu0 0.0
        %240 = vmatpush.msra.mxu0 0.0
        %241 = vmatpush.msra.mxu0 0.0
        %242 = vmatpush.msra.mxu0 0.0
        %243 = vmatpush.msra.mxu0 0.0
        %244 = vmatpush.msra.mxu0 %v222
        %245 = vmatpush.msra.mxu0 %v221
        %246 = vmatmul.f32.gmra.mxu0 %v225
        %v247 = vpop.f32.mrf.mxu0
        %v248 = vadd.f32 0.0, %v247
        %249 = vmatmul.f32.gmra.mxu0 %v228
        %v250 = vpop.f32.mrf.mxu0
        %v251 = vadd.f32 0.0, %v250
        %252 = vdwg.mxu0
        %vm253 = vcmask 261120
        %254 = vst.msk [vmem:[#allocation2] sm:$0xff] %vm253, %v248
        %255 = vst.msk [vmem:[#allocation2 + $0x8] sm:$0xff] %vm253, %v251
        %256 = vxpose.xlu0.b32.start [1/16] %v219, 128
        %257 = vxpose.xlu0.b32.cont [2/16] %v220, 128
        %258 = vxpose.xlu0.b32.cont [3/16] 0.0, 128
        %259 = vxpose.xlu0.b32.cont [4/16] 0.0, 128
        %260 = vxpose.xlu0.b32.cont [5/16] 0.0, 128
        %261 = vxpose.xlu0.b32.cont [6/16] 0.0, 128
        %262 = vxpose.xlu0.b32.cont [7/16] 0.0, 128
        %263 = vxpose.xlu0.b32.cont [8/16] 0.0, 128
        %264 = vxpose.xlu0.b32.cont [9/16] 0.0, 128
        %265 = vxpose.xlu0.b32.cont [10/16] 0.0, 128
        %266 = vxpose.xlu0.b32.cont [11/16] 0.0, 128
        %267 = vxpose.xlu0.b32.cont [12/16] 0.0, 128
        %268 = vxpose.xlu0.b32.cont [13/16] 0.0, 128
        %269 = vxpose.xlu0.b32.cont [14/16] 0.0, 128
        %270 = vxpose.xlu0.b32.cont [15/16] 0.0, 128
        %271 = vxpose.xlu0.b32.end [16/16] 0.0, 128
        %v272 = vpop.trf.xlu0
        %v273 = vpop.trf.xlu0
        %v274 = vpop.trf.xlu0
        %v275 = vpop.trf.xlu0
        %v276 = vpop.trf.xlu0
        %v277 = vpop.trf.xlu0
        %v278 = vpop.trf.xlu0
        %v279 = vpop.trf.xlu0
        %v280 = vpop.trf.xlu0
        %v281 = vpop.trf.xlu0
        %v282 = vpop.trf.xlu0
        %v283 = vpop.trf.xlu0
        %v284 = vpop.trf.xlu0
        %v285 = vpop.trf.xlu0
        %v286 = vpop.trf.xlu0
        %v287 = vpop.trf.xlu0
        %v289 = vsel %vm223, %v272, 0
        %v292 = vsel %vm223, %v273, 0
        %294 = vmatpush.msra.mxu0 0.0
        %295 = vmatpush.msra.mxu0 0.0
        %296 = vmatpush.msra.mxu0 0.0
        %297 = vmatpush.msra.mxu0 0.0
        %298 = vmatpush.msra.mxu0 0.0
        %299 = vmatpush.msra.mxu0 0.0
        %300 = vmatpush.msra.mxu0 0.0
        %301 = vmatpush.msra.mxu0 0.0
        %302 = vmatpush.msra.mxu0 0.0
        %303 = vmatpush.msra.mxu0 0.0
        %304 = vmatpush.msra.mxu0 0.0
        %305 = vmatpush.msra.mxu0 0.0
        %306 = vmatpush.msra.mxu0 0.0
        %307 = vmatpush.msra.mxu0 0.0
        %308 = vmatpush.msra.mxu0 %v222
        %309 = vmatpush.msra.mxu0 %v221
        %310 = vmatmul.f32.gmra.mxu0 %v289
        %v311 = vpop.f32.mrf.mxu0
        %v312 = vadd.f32 0.0, %v311
        %313 = vmatmul.f32.gmra.mxu0 %v292
        %v314 = vpop.f32.mrf.mxu0
        %v315 = vadd.f32 0.0, %v314
        %316 = vdwg.mxu0
        %317 = vst.msk [vmem:[#allocation3] sm:$0xff] %vm253, %v312
        %318 = vst.msk [vmem:[#allocation3 + $0x8] sm:$0xff] %vm253, %v315
        %v319 = vld [vmem:[%s216] sm:$0xff]
        %v320 = vld [vmem:[%s216 + $0x8] sm:$0xff]
        %v321 = vld [vmem:[#allocation2] sm:$0xff]
        %v322 = vld [vmem:[#allocation2 + $0x8] sm:$0xff]
        %v323 = vld [vmem:[#allocation3] sm:$0xff]
        %v324 = vld [vmem:[#allocation3 + $0x8] sm:$0xff]
        %v325 = vld [vmem:[%s2] sm:$0xff]
        %v326 = vld [vmem:[%s2 + $0x8] sm:$0xff]
        %v327 = vld [vmem:[%s2 + $0x10] sm:$0xff]
        %v328 = vld [vmem:[%s2 + $0x18] sm:$0xff]
        %v329 = vld [vmem:[%s2 + $0x20] sm:$0xff]
        %v330 = vld [vmem:[%s2 + $0x28] sm:$0xff]
        %v331 = vld [vmem:[%s2 + $0x30] sm:$0xff]
        %v332 = vld [vmem:[%s2 + $0x38] sm:$0xff]
        %v334 = vsel %vm253, %v323, 0
        %v337 = vsel %vm253, %v324, 0
        %339 = vmatpush.msra.mxu0 0.0
        %340 = vmatpush.msra.mxu0 0.0
        %341 = vmatpush.msra.mxu0 0.0
        %342 = vmatpush.msra.mxu0 0.0
        %343 = vmatpush.msra.mxu0 0.0
        %344 = vmatpush.msra.mxu0 0.0
        %345 = vmatpush.msra.mxu0 0.0
        %346 = vmatpush.msra.mxu0 0.0
        %347 = vmatpush.msra.mxu0 0.0
        %348 = vmatpush.msra.mxu0 0.0
        %349 = vmatpush.msra.mxu0 0.0
        %350 = vmatpush.msra.mxu0 0.0
        %351 = vmatpush.msra.mxu0 %v332
        %352 = vmatpush.msra.mxu0 %v331
        %353 = vmatpush.msra.mxu0 %v330
        %354 = vmatpush.msra.mxu0 %v329
        %355 = vmatmul.f32.gmra.mxu0 %v334
        %v356 = vpop.f32.mrf.mxu0
        %v357 = vadd.f32 0.0, %v356
        %358 = vmatmul.f32.gmra.mxu0 %v337
        %v359 = vpop.f32.mrf.mxu0
        %v360 = vadd.f32 0.0, %v359
        %361 = vdwg.mxu0
        %v363 = vsel %vm253, %v321, 0
        %v366 = vsel %vm253, %v322, 0
        %368 = vmatpush.msra.mxu0 0.0
        %369 = vmatpush.msra.mxu0 0.0
        %370 = vmatpush.msra.mxu0 0.0
        %371 = vmatpush.msra.mxu0 0.0
        %372 = vmatpush.msra.mxu0 0.0
        %373 = vmatpush.msra.mxu0 0.0
        %374 = vmatpush.msra.mxu0 0.0
        %375 = vmatpush.msra.mxu0 0.0
        %376 = vmatpush.msra.mxu0 0.0
        %377 = vmatpush.msra.mxu0 0.0
        %378 = vmatpush.msra.mxu0 0.0
        %379 = vmatpush.msra.mxu0 0.0
        %380 = vmatpush.msra.mxu0 %v328
        %381 = vmatpush.msra.mxu0 %v327
        %382 = vmatpush.msra.mxu0 %v326
        %383 = vmatpush.msra.mxu0 %v325
        %384 = vmatmul.f32.gmra.mxu0 %v363
        %v385 = vpop.f32.mrf.mxu0
        %v386 = vadd.f32 %v357, %v385
        %387 = vmatmul.f32.gmra.mxu0 %v366
        %v388 = vpop.f32.mrf.mxu0
        %v389 = vadd.f32 %v360, %v388
        %390 = vdwg.mxu0
        %v391 = vld [vmem:[%s3] sm:$0x1]
        %v393 = vperm.slane %v391, 0
        %v395 = vadd.f32 %v386, %v393
        %v396 = vadd.f32 %v389, %v393
        %v397 = vld [vmem:[%s2 + $0x40] sm:$0xff]
        %v398 = vld [vmem:[%s2 + $0x48] sm:$0xff]
        %v399 = vld [vmem:[%s2 + $0x50] sm:$0xff]
        %v400 = vld [vmem:[%s2 + $0x58] sm:$0xff]
        %v402 = vsel %vm253, %v319, 0
        %v405 = vsel %vm253, %v320, 0
        %407 = vmatpush.msra.mxu0 0.0
        %408 = vmatpush.msra.mxu0 0.0
        %409 = vmatpush.msra.mxu0 0.0
        %410 = vmatpush.msra.mxu0 0.0
        %411 = vmatpush.msra.mxu0 0.0
        %412 = vmatpush.msra.mxu0 0.0
        %413 = vmatpush.msra.mxu0 0.0
        %414 = vmatpush.msra.mxu0 0.0
        %415 = vmatpush.msra.mxu0 0.0
        %416 = vmatpush.msra.mxu0 0.0
        %417 = vmatpush.msra.mxu0 0.0
        %418 = vmatpush.msra.mxu0 0.0
        %419 = vmatpush.msra.mxu0 %v400
        %420 = vmatpush.msra.mxu0 %v399
        %421 = vmatpush.msra.mxu0 %v398
        %422 = vmatpush.msra.mxu0 %v397
        %423 = vmatmul.f32.gmra.mxu0 %v402
        %v424 = vpop.f32.mrf.mxu0
        %v425 = vadd.f32 0.0, %v424
        %426 = vmatmul.f32.gmra.mxu0 %v405
        %v427 = vpop.f32.mrf.mxu0
        %v428 = vadd.f32 0.0, %v427
        %429 = vdwg.mxu0
        %v430 = vadd.f32 %v395, %v425
        %v431 = vadd.f32 %v396, %v428
        %v432 = vxor.u32 %v430, 2147483648
        %v433 = vxor.u32 %v431, 2147483648
        %v434 = vmul.f32 %v432, 1.442695
        %v435 = vpow.pop %v434
        %v436 = vmul.f32 %v433, 1.442695
        %v437 = vpow.pop %v436
        %v438 = vadd.f32 %v435, 1.0
        %v439 = vadd.f32 %v437, 1.0
        %v440 = vrcp.pop %v438
        %v441 = vmul.f32 %v438, %v440
        %v442 = vsub.f32 1.0, %v441
        %v443 = vmul.f32 %v440, %v442
        %v444 = vadd.f32 %v440, %v443
        %vm445 = vweird.f32 %v438
        %vm446 = vweird.f32 %v440
        %vm447 = vmor %vm445, %vm446
        %v448 = vsel %vm447, %v440, %v444
        %v449 = vand.u32 2147483647, %v438
        %vm450 = vcmp.eq.f32.partialorder %v449, 8.507059e+37
        %v451 = vand.u32 %v438, 2147483648
        %v452 = vor.u32 1.1754944e-38, %v451
        %v453 = vsel %vm450, %v452, %v448
        %v454 = vmul.f32 1.0, %v453
        %v455 = vrcp.pop %v439
        %v456 = vmul.f32 %v439, %v455
        %v457 = vsub.f32 1.0, %v456
        %v458 = vmul.f32 %v455, %v457
        %v459 = vadd.f32 %v455, %v458
        %vm460 = vweird.f32 %v439
        %vm461 = vweird.f32 %v455
        %vm462 = vmor %vm460, %vm461
        %v463 = vsel %vm462, %v455, %v459
        %v464 = vand.u32 2147483647, %v439
        %vm465 = vcmp.eq.f32.partialorder %v464, 8.507059e+37
        %v466 = vand.u32 %v439, 2147483648
        %v467 = vor.u32 1.1754944e-38, %v466
        %v468 = vsel %vm465, %v467, %v463
        %v469 = vmul.f32 1.0, %v468
        %v470 = vmul.f32 %v454, %v319
        %v471 = vmul.f32 %v469, %v320
        %476 = vrot.lane.b32.xlu0 %v397, 64
        %v477 = vpop.permute.xlu0 %476
        %478 = vrot.lane.b32.xlu0 %v398, 64
        %v479 = vpop.permute.xlu0 %478
        %480 = vrot.lane.b32.xlu0 %v399, 64
        %v481 = vpop.permute.xlu0 %480
        %482 = vrot.lane.b32.xlu0 %v400, 64
        %v483 = vpop.permute.xlu0 %482
        %v489 = vsel %vm253, %v470, 0
        %v492 = vsel %vm253, %v471, 0
        %494 = vmatpush.msra.mxu0 0.0
        %495 = vmatpush.msra.mxu0 0.0
        %496 = vmatpush.msra.mxu0 0.0
        %497 = vmatpush.msra.mxu0 0.0
        %498 = vmatpush.msra.mxu0 0.0
        %499 = vmatpush.msra.mxu0 0.0
        %500 = vmatpush.msra.mxu0 0.0
        %501 = vmatpush.msra.mxu0 0.0
        %502 = vmatpush.msra.mxu0 0.0
        %503 = vmatpush.msra.mxu0 0.0
        %504 = vmatpush.msra.mxu0 0.0
        %505 = vmatpush.msra.mxu0 0.0
        %506 = vmatpush.msra.mxu0 %v483
        %507 = vmatpush.msra.mxu0 %v481
        %508 = vmatpush.msra.mxu0 %v479
        %509 = vmatpush.msra.mxu0 %v477
        %510 = vmatmul.f32.gmra.mxu0 %v489
        %v511 = vpop.f32.mrf.mxu0
        %v512 = vadd.f32 0.0, %v511
        %513 = vmatmul.f32.gmra.mxu0 %v492
        %v514 = vpop.f32.mrf.mxu0
        %v515 = vadd.f32 0.0, %v514
        %516 = vdwg.mxu0
        %519 = vrot.lane.b32.xlu0 %v512, 64
        %v520 = vpop.permute.xlu0 %519
        %521 = vrot.lane.b32.xlu0 %v515, 64
        %v522 = vpop.permute.xlu0 %521
        %v525 = vadd.f32 %v395, %v520
        %v526 = vadd.f32 %v396, %v522
        %v527 = vtanh.pop %v525
        %v528 = vtanh.pop %v526
        %v529 = vsub.f32 1.0, %v454
        %v530 = vsub.f32 1.0, %v469
        %531 = vrot.lane.b32.xlu0 %v319, 32
        %v532 = vpop.permute.xlu0 %531
        %533 = vrot.lane.b32.xlu0 %v320, 32
        %v534 = vpop.permute.xlu0 %533
        %v537 = vmul.f32 %v529, %v532
        %v538 = vmul.f32 %v530, %v534
        %541 = vrot.lane.b32.xlu0 %v527, 96
        %v542 = vpop.permute.xlu0 %541
        %543 = vrot.lane.b32.xlu0 %v528, 96
        %v544 = vpop.permute.xlu0 %543
        %v547 = vmul.f32 %v454, %v542
        %v548 = vmul.f32 %v469, %v544
        %v549 = vadd.f32 %v537, %v547
        %v550 = vadd.f32 %v538, %v548
        %553 = vrot.lane.b32.xlu0 %v549, 96
        %v554 = vpop.permute.xlu0 %553
        %555 = vrot.lane.b32.xlu0 %v550, 96
        %v556 = vpop.permute.xlu0 %555
        %559 = vst.msk [vmem:[%s206] sm:$0xff] %vm253, %v554
        %560 = vst.msk [vmem:[%s206 + $0x8] sm:$0xff] %vm253, %v556
        %s561 = sand.u32 %s120, 1
        %s562 = scalar_lea.sflag [#allocation5], %s561
        %s563 = sand.u32 %s120, 1
        %s564 = smul.addr %s563, 16
        %s565 = scalar_lea.vmem [#allocation4], %s564
        // Predicated region
        $region37: #{propagator_pallas.1} parent=35 // pred_check
          %p566 = pneg %p130
        $region38: #{propagator_pallas.1} parent=35 // pred_check_branch
          %568 = sbr.rel (%p566) target = $region40
        $region39: #{propagator_pallas.1} parent=35 // pred_region
          %s569 = smul.u32 2, %s18
          %571 = vsyncadd %s562, 0
          %s572 = smul.addr %s569, 8
          %s573 = scalar_lea.hbm %s4, %s572
          %s574 = sshll.u32 %s565, 4
          %s575 = int_to_ptr.vmem [resolvable:$true] %s574
          %s576 = sshll.u32 %s573, 4
          %s577 = int_to_ptr.hbm [resolvable:$true] %s576
          %582 = dma.vmem_to_hbm [thread:$0]  %s575, 256, %s577, %s562, 128, 128, 8
        $region40: #{propagator_pallas.1} parent=35 // pred_fallthru
          _
      $region36: #{propagator_pallas.1} parent=5 // pred_fallthru
        _
      %p583 = scmp.le.s32.totalorder 2, %s13
      // Predicated region
      $region41: #{propagator_pallas.1} parent=5 // pred_check
        %p584 = pneg %p583
      $region42: #{propagator_pallas.1} parent=5 // pred_check_branch
        %586 = sbr.rel (%p584) target = $region44
      $region43: #{propagator_pallas.1} parent=5 // pred_region
        %s587 = ssub.s32 %s13, 2
        // Predicated region
        $region45: #{propagator_pallas.1} parent=43 // pred_check
          %p588 = pneg %p136
        $region46: #{propagator_pallas.1} parent=43 // pred_check_branch
          %590 = sbr.rel (%p588) target = $region48
        $region47: #{propagator_pallas.1} parent=43 // pred_region
          %s591 = sand.u32 %s121, 1
          %s592 = scalar_lea.sflag [#allocation5], %s591
          %s593 = sand.u32 %s121, 1
          %s594 = smul.addr %s593, 16
          %s595 = scalar_lea.vmem [#allocation4], %s594
          %597 = dma.done %s592, 256
        $region48: #{propagator_pallas.1} parent=43 // pred_fallthru
          _
      $region44: #{propagator_pallas.1} parent=5 // pred_fallthru
        _
    $region6: #{propagator_pallas.1} parent=1 // loop_footer
      %s17 = sadd.s32 1, %s13
    $region7: #{propagator_pallas.1} parent=1 // loop_footer_branch
      %12 = sbr.rel target = $region3
    $region8: #{propagator_pallas.1} parent=1 // loop_exit
      _
    %598 = vsyncpa [#allocation5], 1
    %s599 = scalar_lea.sflag [#allocation5], 1
    %600 = vsyncpa %s599, 1

</llo_original>
